<compile_context>
chip_gen: v5e
topology: v5e:2x2
jax: 0.10.0
libtpu: 0.0.40
codegen_flags: <defaults>
</compile_context>

<pallas_src>
import jax
import jax.numpy as jnp
from jax.experimental import pallas as pl
from jax.experimental.pallas import tpu as pltpu


def _round_up(a, b):
    return ((a + b - 1) // b) * b


def _lorentz_matmul_kernel(x_ref, mT_ref, o_ref):
    # x_ref : (tile_p, pack*in_dim)        packed input rows (lane-dense)
    # mT_ref: (pack*in_dim, pack*out_dim)  block-diagonal projection, VMEM-resident
    # o_ref : (tile_p, pack*out_dim)       packed output rows
    o_ref[...] = jnp.dot(
        x_ref[...], mT_ref[...], preferred_element_type=jnp.float32
    ).astype(o_ref.dtype)


def _build_projection(v, theta, metric, out_dim):
    """MT = [v; W].T ([in_dim, out_dim]), exactly as the PyTorch module builds it."""
    in_dim = v.shape[1]
    out_dim_m1 = out_dim - 1
    vvT = v.T @ v + metric                       # [in_dim, in_dim], symmetric
    # TODO(synk): eigh has no Pallas equivalent; tiny in_dim x in_dim problem
    # independent of N, so it stays plain JAX.  When v/theta/metric are static
    # across calls, hoist/cache this outside the per-call path.
    eig, U = jnp.linalg.eigh(vvT)                # ascending eigenvalues (like torch)
    if theta is not None:
        L = jnp.diag(jnp.sqrt(jnp.clip(eig, 0.0)))
        W = jnp.concatenate([L @ U.T, theta], axis=0)          # [out_dim-1, in_dim]
    else:
        start = in_dim - out_dim_m1
        U_sel = U[:, start:start + out_dim_m1]                 # [in_dim, out_dim-1]
        L = jnp.diag(jnp.sqrt(jnp.clip(eig[start:start + out_dim_m1], 0.0)))
        W = L @ U_sel.T                                        # [out_dim-1, in_dim]
    M = jnp.concatenate([v, W], axis=0)          # [out_dim, in_dim]
    return M.T                                   # [in_dim, out_dim]


def _pick_tile(num_packed_rows, tile_rows):
    """Packed-row tile: multiple of 8 sublanes (or == full extent), and >= 2 grid
    steps when there is enough work so v7x's two TensorCores both get a share."""
    P = num_packed_rows
    tile_rows = max(8, (int(tile_rows) // 8) * 8)
    if P <= tile_rows:
        tile = P                                  # single full-extent block (legal)
        if P > 16:
            half = _round_up(pl.cdiv(P, 2), 8)
            if half < P:
                tile = half                       # >= 2 steps for megacore
    else:
        tile = tile_rows
    return tile


def lorentz_transformation(x, v, theta, metric, out_dim, *,
                           tile_rows=1024, min_pallas_rows=512):
    """JAX/Pallas equivalent of LorentzTransformation.forward.

    x      : [N, in_dim]   (f32 or bf16 — kernel runs in x.dtype, f32 accumulation)
    v      : [1, in_dim]
    theta  : [out_dim - 1 - in_dim, in_dim] or None
    metric : [in_dim, in_dim]  (diag(-1, 1, ..., 1))
    returns: [N, out_dim]
    """
    N, in_dim = x.shape
    out_dtype = x.dtype
    MT = _build_projection(v, theta, metric, out_dim).astype(x.dtype)  # [in_dim, out_dim]

    if N < min_pallas_rows:
        # Small-N fallback: pallas_call launch + pipeline warmup dominates.
        return jnp.dot(x, MT, preferred_element_type=jnp.float32).astype(out_dtype)

    # Row-pack factor: fold `pack` consecutive rows into one lane-dense row.
    if 0 < in_dim <= 128 and 128 % in_dim == 0:
        pack = 128 // in_dim
    else:
        pack = 1

    n_pad = _round_up(N, pack)
    x_in = x
    if n_pad != N:
        # At most (pack - 1) rows of padding; the common N % pack == 0 case takes
        # no pad copy and no output slice at all.
        x_in = jnp.pad(x, ((0, n_pad - N), (0, 0)))

    P = n_pad // pack
    packed_in = pack * in_dim
    packed_out = pack * out_dim

    # Free row-major reshape: [n_pad, in_dim] -> [P, pack*in_dim].
    x_packed = x_in.reshape(P, packed_in)
    # Block-diagonal projection: each packed row maps to a packed output row.
    MT_packed = jnp.kron(jnp.eye(pack, dtype=MT.dtype), MT)   # [pack*in_dim, pack*out_dim]

    tile = _pick_tile(P, tile_rows)
    grid_n = pl.cdiv(P, tile)

    itemsize = jnp.dtype(x.dtype).itemsize
    # Lane/sublane-padded VMEM accounting: Mosaic lays the minor dim out in
    # 128-lane tiles and the second-minor in 8-sublane rows.
    lane_in = _round_up(packed_in, 128)
    lane_out = _round_up(packed_out, 128)
    sub_tile = _round_up(tile, 8)
    needed = (2 * sub_tile * lane_in * itemsize            # double-buffered x tiles
              + 2 * sub_tile * lane_out * itemsize         # double-buffered out tiles
              + _round_up(packed_in, 8) * lane_out * itemsize)  # resident MT_packed
    # Generous headroom, capped at 32 MiB (well under v7x's 64 MiB physical VMEM).
    vmem_limit = int(min(max(2 * needed, 8 * 1024 * 1024), 32 * 1024 * 1024))

    cost = pl.CostEstimate(
        flops=2 * n_pad * in_dim * out_dim,
        transcendentals=0,
        bytes_accessed=(n_pad * in_dim + n_pad * out_dim) * itemsize
                        + packed_in * packed_out * itemsize,
    )

    out_packed = pl.pallas_call(
        _lorentz_matmul_kernel,
        out_shape=jax.ShapeDtypeStruct((P, packed_out), out_dtype),
        grid=(grid_n,),
        in_specs=[
            pl.BlockSpec((tile, packed_in), lambda i: (i, 0)),
            # Tiny constant projection matrix: fully VMEM-resident, no
            # blocking / double-buffering machinery around it.
            pl.BlockSpec(memory_space=pltpu.MemorySpace.VMEM),
        ],
        out_specs=pl.BlockSpec((tile, packed_out), lambda i: (i, 0)),
        compiler_params=pltpu.CompilerParams(
            dimension_semantics=("parallel",),
            vmem_limit_bytes=vmem_limit,
        ),
        cost_estimate=cost,
    )(x_packed, MT_packed)

    # Free reshape back; slice off pad rows only if we actually padded.
    out = out_packed.reshape(n_pad, out_dim)
    if n_pad != N:
        out = out[:N]
    return out


def _reference(x, v, theta, metric, out_dim):
    """Pure-JAX reference mirroring the PyTorch forward exactly."""
    in_dim = v.shape[1]
    out_dim_m1 = out_dim - 1
    vvT = v.T @ v + metric
    eig, U = jnp.linalg.eigh(vvT)
    if theta is not None:
        L = jnp.diag(jnp.sqrt(jnp.clip(eig, 0.0)))
        W = jnp.concatenate([L @ U.T, theta], axis=0)
    else:
        start = in_dim - out_dim_m1
        U_sel = U[:, start:start + out_dim_m1]
        L = jnp.diag(jnp.sqrt(jnp.clip(eig[start:start + out_dim_m1], 0.0)))
        W = L @ U_sel.T
    return jnp.concatenate([x @ v.T, x @ W.T], axis=-1)


def _make_params(key, in_dim, out_dim):
    v = jax.random.normal(key, (1, in_dim), dtype=jnp.float32)
    theta = None if (out_dim - 1) <= in_dim else jnp.zeros(
        (out_dim - 1 - in_dim, in_dim), dtype=jnp.float32)
    diag = jnp.ones((in_dim,), dtype=jnp.float32).at[0].set(-1.0)
    metric = jnp.diag(diag)
    return v, theta, metric


if __name__ == "__main__":
    key = jax.random.PRNGKey(0)
    kx1, kv1, kx2, kv2, kx3, kx4 = jax.random.split(key, 6)

    # ---- Case 1: main path (out_dim-1 <= in_dim -> theta is None) -------
    N1, in_dim1, out_dim1 = 512, 32, 17
    x1 = jax.random.normal(kx1, (N1, in_dim1), dtype=jnp.float32)
    v1, theta1, metric1 = _make_params(kv1, in_dim1, out_dim1)
    out1 = lorentz_transformation(x1, v1, theta1, metric1, out_dim1,
                                  tile_rows=256, min_pallas_rows=0)
    out1 = jax.block_until_ready(out1)
    ref1 = _reference(x1, v1, theta1, metric1, out_dim1)
    assert out1.shape == (N1, out_dim1), out1.shape
    assert jnp.allclose(out1, ref1, atol=1e-4, rtol=1e-4), (
        float(jnp.max(jnp.abs(out1 - ref1))))

    # ---- Case 2: ragged packed-row count (partial final grid block) ------
    N2 = 500                                     # multiple of pack=4, no pad copy
    x2 = jax.random.normal(kx3, (N2, in_dim1), dtype=jnp.float32)
    out2 = lorentz_transformation(x2, v1, theta1, metric1, out_dim1,
                                  tile_rows=256, min_pallas_rows=0)
    out2 = jax.block_until_ready(out2)
    ref2 = _reference(x2, v1, theta1, metric1, out_dim1)
    assert out2.shape == (N2, out_dim1), out2.shape
    assert jnp.allclose(out2, ref2, atol=1e-4, rtol=1e-4), (
        float(jnp.max(jnp.abs(out2 - ref2))))

    # ---- Case 3: N not a multiple of pack (tiny pad + output slice) ------
    N3 = 514
    x3 = jax.random.normal(kx4, (N3, in_dim1), dtype=jnp.float32)
    out3 = lorentz_transformation(x3, v1, theta1, metric1, out_dim1,
                                  tile_rows=256, min_pallas_rows=0)
    out3 = jax.block_until_ready(out3)
    ref3 = _reference(x3, v1, theta1, metric1, out_dim1)
    assert out3.shape == (N3, out_dim1), out3.shape
    assert jnp.allclose(out3, ref3, atol=1e-4, rtol=1e-4), (
        float(jnp.max(jnp.abs(out3 - ref3))))

    # ---- Case 4: theta branch (out_dim-1 > in_dim) ------------------------
    N4, in_dim4, out_dim4 = 256, 8, 12
    x4 = jax.random.normal(kx2, (N4, in_dim4), dtype=jnp.float32)
    v4, theta4, metric4 = _make_params(kv2, in_dim4, out_dim4)
    out4 = lorentz_transformation(x4, v4, theta4, metric4, out_dim4,
                                  tile_rows=128, min_pallas_rows=0)
    out4 = jax.block_until_ready(out4)
    ref4 = _reference(x4, v4, theta4, metric4, out_dim4)
    assert out4.shape == (N4, out_dim4), out4.shape
    assert jnp.allclose(out4, ref4, atol=1e-4, rtol=1e-4), (
        float(jnp.max(jnp.abs(out4 - ref4))))

    # ---- Case 5: natively-bf16 input (loose tolerance vs f32 ref) ---------
    x5 = x1.astype(jnp.bfloat16)                 # simulates a bf16 producer upstream
    out5 = lorentz_transformation(x5, v1, theta1, metric1, out_dim1,
                                  tile_rows=256, min_pallas_rows=0)
    out5 = jax.block_until_ready(out5)
    assert out5.shape == (N1, out_dim1), out5.shape
    assert float(jnp.max(jnp.abs(out5.astype(jnp.float32) - ref1))) < 1.0

    print("KERNEL_OK")
</pallas_src>

<mosaic_0001>
module attributes {stable_mosaic.version = 11 : i64} {
  func.func @_lorentz_matmul_kernel(%arg0: i32, %arg1: memref<64x128xf32, #tpu.memory_space<vmem>>, %arg2: memref<128x68xf32, #tpu.memory_space<vmem>>, %arg3: memref<64x68xf32, #tpu.memory_space<vmem>>) attributes {dimension_semantics = [#tpu.dimension_semantics<parallel>], iteration_bounds = array<i64: 2>, scalar_prefetch = 0 : i64, scratch_operands = 0 : i64, tpu.core_type = #tpu.core_type<tc>, window_params = [{transform_indices = @transform_0, window_bounds = array<i64: 64, 128>}, {pipeline_mode = #tpu.pipeline_mode<synchronous>, transform_indices = @transform_1, window_bounds = array<i64: 128, 68>}, {transform_indices = @transform_2, window_bounds = array<i64: 64, 68>}]} {
    %c0 = arith.constant 0 : index
    %c0_0 = arith.constant 0 : index
    %0 = vector.load %arg1[%c0, %c0_0] : memref<64x128xf32, #tpu.memory_space<vmem>>, vector<64x128xf32>
    %c0_1 = arith.constant 0 : index
    %c0_2 = arith.constant 0 : index
    %1 = vector.load %arg2[%c0_1, %c0_2] : memref<128x68xf32, #tpu.memory_space<vmem>>, vector<128x68xf32>
    %cst = arith.constant dense<0.000000e+00> : vector<64x68xf32>
    %2 = tpu.matmul %0, %1, %cst {dimension_numbers = #tpu.dot_dimension_numbers<[1], [0], [0], [1], [0, 0, 1, 1], [], []>} : vector<64x128xf32>, vector<128x68xf32>, vector<64x68xf32> -> vector<64x68xf32>
    %c0_3 = arith.constant 0 : index
    %c0_4 = arith.constant 0 : index
    %3 = vector.load %arg3[%c0_3, %c0_4] : memref<64x68xf32, #tpu.memory_space<vmem>>, vector<64x68xf32>
    tpu.vector_store %arg3[%c0_3, %c0_4], %2 {strides = array<i32>} : memref<64x68xf32, #tpu.memory_space<vmem>>, vector<64x68xf32>,
    return
  }
  func.func @transform_0(%arg0: i32) -> (i32, i32) {
    %c0_i32 = arith.constant 0 : i32
    %c0_i32_0 = arith.constant 0 : i32
    return %arg0, %c0_i32 : i32, i32
  }
  func.func @transform_1(%arg0: i32) -> (i32, i32) {
    %c0_i32 = arith.constant 0 : i32
    %c0_i32_0 = arith.constant 0 : i32
    %c0_i32_1 = arith.constant 0 : i32
    return %c0_i32, %c0_i32_0 : i32, i32
  }
  func.func @transform_2(%arg0: i32) -> (i32, i32) {
    %c0_i32 = arith.constant 0 : i32
    %c0_i32_0 = arith.constant 0 : i32
    return %arg0, %c0_i32 : i32, i32
  }
}

</mosaic_0001>

<llo_original>
// kernel: tpu_custom_call.1
$region0: #{tpu_custom_call.1}
  #allocation0 [shape = 'u32[]', space=smem, size = 0x4, offset = 0x4, fixed_abs, tag = 'smem constant byte address 0x4 - core index']
  #allocation1 [shape = 'u32[72,128]{1,0:T(1,128)}', space=vmem, size = 0x9000, scoped, tag = 'internal scratch']
  %s0 = inlined_call_operand.vmem [shape: f32[128,128], index: 0, kind: input, shape index: {}]
  %s1 = inlined_call_operand.vmem [shape: f32[128,68], index: 1, kind: input, shape index: {}]
  %s2 = inlined_call_operand.vmem [shape: f32[128,68], index: 2, kind: output, shape index: {}]
  %s3 = sld [smem:[#allocation0]]
  $region41: #{tpu_custom_call.1} parent=0
    _
  %s5 = ssub.s32 1, %s3
  %s6 = scalar_select 0, %s5, %s3
  loop: start=0, step=1, limit=4
  $region2: #{tpu_custom_call.1} parent=0 // loop_pre_header
    _
  $region3: #{tpu_custom_call.1} parent=0 // loop_header
    %s8 = sphi 0, %s12
    %p9 = scmp.ge.s32.totalorder %s8, 4
    %s18 = sphi 0, %s20
    %s21 = sphi 0, %s18
    %s22 = sphi 0, %s21
    %s38 = sphi 0, %s22
    %s42 = sphi 0, %s42
    %s44 = sphi 0, %s42
    %s45 = sphi 0, %s44
    %s59 = sphi 0, %s45
    %s65 = sphi 0, %s67
    %s68 = sphi 0, %s65
    %s69 = sphi 0, %s68
    %s85 = sphi 0, %s69
  $region4: #{tpu_custom_call.1} parent=0 // loop_header_branch
    %11 = sbr.rel (%p9) target = $region8
  $region5: #{tpu_custom_call.1} parent=0 // loop_body
    %s13 = ssub.s32 %s8, 1
    %s14 = ssub.s32 %s8, 2
    %s15 = sadd.s32 %s8, 1
    %s16 = ssub.s32 %s8, %s15
    %p17 = scmp.eq.s32.totalorder %s16, 0
    %s19 = sadd.s32 %s18, 1
    %s20 = scalar_select %p17, %s18, %s19
    %p23 = pneg %p17
    %p24 = scmp.eq.s32.totalorder %s8, 1
    %p25 = por %p23, %p24
    %p26 = scmp.ne.s32.totalorder %s18, %s21
    %p27 = scmp.eq.s32.totalorder %s8, 0
    %p28 = por %p26, %p27
    %p29 = scmp.ne.s32.totalorder %s18, %s21
    %p30 = scmp.eq.s32.totalorder %s13, 1
    %p31 = por %p29, %p30
    %p32 = scmp.ne.s32.totalorder %s21, %s22
    %p33 = scmp.eq.s32.totalorder %s13, 0
    %p34 = por %p32, %p33
    %p35 = scmp.ne.s32.totalorder %s21, %s22
    %p36 = scmp.eq.s32.totalorder %s14, 1
    %p37 = por %p35, %p36
    %p39 = scmp.ne.s32.totalorder %s22, %s38
    %p40 = scmp.eq.s32.totalorder %s14, 0
    %p41 = por %p39, %p40
    %s43 = sadd.s32 %s42, 1
    %p46 = scmp.eq.s32.totalorder %s8, 1
    %p47 = scmp.ne.s32.totalorder %s42, %s44
    %p48 = scmp.eq.s32.totalorder %s8, 0
    %p49 = por %p47, %p48
    %p50 = scmp.ne.s32.totalorder %s42, %s44
    %p51 = scmp.eq.s32.totalorder %s13, 1
    %p52 = por %p50, %p51
    %p53 = scmp.ne.s32.totalorder %s44, %s45
    %p54 = scmp.eq.s32.totalorder %s13, 0
    %p55 = por %p53, %p54
    %p56 = scmp.ne.s32.totalorder %s44, %s45
    %p57 = scmp.eq.s32.totalorder %s14, 1
    %p58 = por %p56, %p57
    %p60 = scmp.ne.s32.totalorder %s45, %s59
    %p61 = scmp.eq.s32.totalorder %s14, 0
    %p62 = por %p60, %p61
    %s63 = ssub.s32 %s8, %s15
    %p64 = scmp.eq.s32.totalorder %s63, 0
    %s66 = sadd.s32 %s65, 1
    %s67 = scalar_select %p64, %s65, %s66
    %p70 = pneg %p64
    %p71 = scmp.eq.s32.totalorder %s8, 1
    %p72 = por %p70, %p71
    %p73 = scmp.ne.s32.totalorder %s65, %s68
    %p74 = scmp.eq.s32.totalorder %s8, 0
    %p75 = por %p73, %p74
    %p76 = scmp.ne.s32.totalorder %s65, %s68
    %p77 = scmp.eq.s32.totalorder %s13, 1
    %p78 = por %p76, %p77
    %p79 = scmp.ne.s32.totalorder %s68, %s69
    %p80 = scmp.eq.s32.totalorder %s13, 0
    %p81 = por %p79, %p80
    %p82 = scmp.ne.s32.totalorder %s68, %s69
    %p83 = scmp.eq.s32.totalorder %s14, 1
    %p84 = por %p82, %p83
    %p86 = scmp.ne.s32.totalorder %s69, %s85
    %p87 = scmp.eq.s32.totalorder %s14, 0
    %p88 = por %p86, %p87
    %p89 = scmp.le.s32.totalorder 1, %s8
    %p90 = scmp.lt.s32.totalorder %s8, 3
    %p91 = pnand %p89, %p90
    %p92 = pneg %p91
    // Predicated region
    $region9: #{tpu_custom_call.1} parent=5 // pred_check
      _
    $region10: #{tpu_custom_call.1} parent=5 // pred_check_branch
      %94 = sbr.rel (%p91) target = $region12
    $region11: #{tpu_custom_call.1} parent=5 // pred_region
      %s95 = ssub.s32 %s8, 1
      // Predicated region
      $region13: #{tpu_custom_call.1} parent=11 // pred_check
        %p96 = pneg %p55
      $region14: #{tpu_custom_call.1} parent=11 // pred_check_branch
        %98 = sbr.rel (%p96) target = $region16
      $region15: #{tpu_custom_call.1} parent=11 // pred_region
        _
      $region16: #{tpu_custom_call.1} parent=11 // pred_fallthru
        _
    $region12: #{tpu_custom_call.1} parent=5 // pred_fallthru
      _
    %p99 = scmp.lt.s32.totalorder %s8, 2
    // Predicated region
    $region17: #{tpu_custom_call.1} parent=5 // pred_check
      %p100 = pneg %p99
    $region18: #{tpu_custom_call.1} parent=5 // pred_check_branch
      %102 = sbr.rel (%p100) target = $region20
    $region19: #{tpu_custom_call.1} parent=5 // pred_region
      // Predicated region
      $region21: #{tpu_custom_call.1} parent=19 // pred_check
        %p103 = pneg %p28
      $region22: #{tpu_custom_call.1} parent=19 // pred_check_branch
        %105 = sbr.rel (%p103) target = $region24
      $region23: #{tpu_custom_call.1} parent=19 // pred_region
        %s106 = smul.u32 8, %s8
        %p107 = scmp.lt.s32.totalorder %s106, 15
        %s108 = scalar_select %p107, %s106, 15
        %s109 = smul.addr %s108, 8
        %s110 = scalar_lea.vmem %s0, %s109
        %s111 = smul.u32 8, %s8
      $region24: #{tpu_custom_call.1} parent=19 // pred_fallthru
        _
    $region20: #{tpu_custom_call.1} parent=5 // pred_fallthru
      _
    %p112 = scmp.le.s32.totalorder 1, %s8
    %p113 = scmp.lt.s32.totalorder %s8, 3
    %p114 = pnand %p112, %p113
    %p115 = pneg %p114
    // Predicated region
    $region25: #{tpu_custom_call.1} parent=5 // pred_check
      _
    $region26: #{tpu_custom_call.1} parent=5 // pred_check_branch
      %117 = sbr.rel (%p114) target = $region28
    $region27: #{tpu_custom_call.1} parent=5 // pred_region
      %s118 = ssub.s32 %s8, 1
      %s119 = smul.u32 8, %s13
      %p120 = scmp.lt.s32.totalorder %s119, 15
      %s121 = scalar_select %p120, %s119, 15
      %s122 = smul.addr %s121, 8
      %s123 = scalar_lea.vmem %s0, %s122
      %p124 = pneg %p34
      %p125 = pneg %p31
      %p126 = pneg %p55
      %p127 = pneg %p52
      %p128 = pneg %p81
      %p129 = pneg %p78
      %s130 = smul.u32 8, %s13
      %p131 = scmp.lt.s32.totalorder %s130, 15
      %s132 = scalar_select %p131, %s130, 15
      %s133 = smul.addr %s132, 8
      %s134 = scalar_lea.vmem %s2, %s133
      %s135 = smul.u32 8, %s13
      %p136 = scmp.lt.s32.totalorder %s135, 15
      %s137 = scalar_select %p136, %s135, 15
      %s138 = smul.addr %s137, 8
      %s139 = scalar_lea.vmem %s0, %s138
      %s140 = smul.u32 8, %s13
      %s141 = smul.u32 8, %s13
      %p142 = scmp.lt.s32.totalorder %s141, 15
      %s143 = scalar_select %p142, %s141, 15
      %s144 = smul.addr %s143, 8
      %s145 = scalar_lea.vmem %s2, %s144
      %s146 = smul.u32 8, %s13
      %v147 = vld [vmem:[%s139] sm:$0xff]
      %v148 = vld [vmem:[%s139 + $0x8] sm:$0xff]
      %v149 = vld [vmem:[%s139 + $0x10] sm:$0xff]
      %v150 = vld [vmem:[%s139 + $0x18] sm:$0xff]
      %v151 = vld [vmem:[%s139 + $0x20] sm:$0xff]
      %v152 = vld [vmem:[%s139 + $0x28] sm:$0xff]
      %v153 = vld [vmem:[%s139 + $0x30] sm:$0xff]
      %v154 = vld [vmem:[%s139 + $0x38] sm:$0xff]
      %v155 = vld [vmem:[%s1] sm:$0xff]
      %v156 = vld [vmem:[%s1 + $0x8] sm:$0xff]
      %v157 = vld [vmem:[%s1 + $0x10] sm:$0xff]
      %v158 = vld [vmem:[%s1 + $0x18] sm:$0xff]
      %v159 = vld [vmem:[%s1 + $0x20] sm:$0xff]
      %v160 = vld [vmem:[%s1 + $0x28] sm:$0xff]
      %v161 = vld [vmem:[%s1 + $0x30] sm:$0xff]
      %v162 = vld [vmem:[%s1 + $0x38] sm:$0xff]
      %v163 = vld [vmem:[%s1 + $0x40] sm:$0xff]
      %v164 = vld [vmem:[%s1 + $0x48] sm:$0xff]
      %v165 = vld [vmem:[%s1 + $0x50] sm:$0xff]
      %v166 = vld [vmem:[%s1 + $0x58] sm:$0xff]
      %v167 = vld [vmem:[%s1 + $0x60] sm:$0xff]
      %v168 = vld [vmem:[%s1 + $0x68] sm:$0xff]
      %v169 = vld [vmem:[%s1 + $0x70] sm:$0xff]
      %v170 = vld [vmem:[%s1 + $0x78] sm:$0xff]
      %171 = vmatpush.msra.mxu0 %v170
      %172 = vmatpush.msra.mxu0 %v169
      %173 = vmatpush.msra.mxu0 %v168
      %174 = vmatpush.msra.mxu0 %v167
      %175 = vmatpush.msra.mxu0 %v166
      %176 = vmatpush.msra.mxu0 %v165
      %177 = vmatpush.msra.mxu0 %v164
      %178 = vmatpush.msra.mxu0 %v163
      %179 = vmatpush.msra.mxu0 %v162
      %180 = vmatpush.msra.mxu0 %v161
      %181 = vmatpush.msra.mxu0 %v160
      %182 = vmatpush.msra.mxu0 %v159
      %183 = vmatpush.msra.mxu0 %v158
      %184 = vmatpush.msra.mxu0 %v157
      %185 = vmatpush.msra.mxu0 %v156
      %186 = vmatpush.msra.mxu0 %v155
      %187 = vmatmul.f32.gmra.mxu0 %v147
      %v188 = vpop.f32.mrf.mxu0
      %v189 = vadd.f32 0.0, %v188
      %190 = vmatmul.f32.gmra.mxu0 %v148
      %v191 = vpop.f32.mrf.mxu0
      %v192 = vadd.f32 0.0, %v191
      %193 = vmatmul.f32.gmra.mxu0 %v149
      %v194 = vpop.f32.mrf.mxu0
      %v195 = vadd.f32 0.0, %v194
      %196 = vmatmul.f32.gmra.mxu0 %v150
      %v197 = vpop.f32.mrf.mxu0
      %v198 = vadd.f32 0.0, %v197
      %199 = vmatmul.f32.gmra.mxu0 %v151
      %v200 = vpop.f32.mrf.mxu0
      %v201 = vadd.f32 0.0, %v200
      %202 = vmatmul.f32.gmra.mxu0 %v152
      %v203 = vpop.f32.mrf.mxu0
      %v204 = vadd.f32 0.0, %v203
      %205 = vmatmul.f32.gmra.mxu0 %v153
      %v206 = vpop.f32.mrf.mxu0
      %v207 = vadd.f32 0.0, %v206
      %208 = vmatmul.f32.gmra.mxu0 %v154
      %v209 = vpop.f32.mrf.mxu0
      %v210 = vadd.f32 0.0, %v209
      %211 = vdwg.mxu0
      %vm212 = vcmask 556032
      %213 = vst.msk [vmem:[%s145] sm:$0xff] %vm212, %v189
      %214 = vst.msk [vmem:[%s145 + $0x8] sm:$0xff] %vm212, %v192
      %215 = vst.msk [vmem:[%s145 + $0x10] sm:$0xff] %vm212, %v195
      %216 = vst.msk [vmem:[%s145 + $0x18] sm:$0xff] %vm212, %v198
      %217 = vst.msk [vmem:[%s145 + $0x20] sm:$0xff] %vm212, %v201
      %218 = vst.msk [vmem:[%s145 + $0x28] sm:$0xff] %vm212, %v204
      %219 = vst.msk [vmem:[%s145 + $0x30] sm:$0xff] %vm212, %v207
      %220 = vst.msk [vmem:[%s145 + $0x38] sm:$0xff] %vm212, %v210
      %s221 = smul.u32 8, %s13
      %p222 = scmp.lt.s32.totalorder %s221, 15
      %s223 = scalar_select %p222, %s221, 15
      %s224 = smul.addr %s223, 8
      %s225 = scalar_lea.vmem %s2, %s224
      // Predicated region
      $region29: #{tpu_custom_call.1} parent=27 // pred_check
        %p226 = pneg %p78
      $region30: #{tpu_custom_call.1} parent=27 // pred_check_branch
        %228 = sbr.rel (%p226) target = $region32
      $region31: #{tpu_custom_call.1} parent=27 // pred_region
        %s229 = smul.u32 8, %s13
      $region32: #{tpu_custom_call.1} parent=27 // pred_fallthru
        _
    $region28: #{tpu_custom_call.1} parent=5 // pred_fallthru
      _
    %p230 = scmp.le.s32.totalorder 2, %s8
    // Predicated region
    $region33: #{tpu_custom_call.1} parent=5 // pred_check
      %p231 = pneg %p230
    $region34: #{tpu_custom_call.1} parent=5 // pred_check_branch
      %233 = sbr.rel (%p231) target = $region36
    $region35: #{tpu_custom_call.1} parent=5 // pred_region
      %s234 = ssub.s32 %s8, 2
      // Predicated region
      $region37: #{tpu_custom_call.1} parent=35 // pred_check
        %p235 = pneg %p84
      $region38: #{tpu_custom_call.1} parent=35 // pred_check_branch
        %237 = sbr.rel (%p235) target = $region40
      $region39: #{tpu_custom_call.1} parent=35 // pred_region
        %s238 = smul.u32 8, %s14
        %p239 = scmp.lt.s32.totalorder %s238, 15
        %s240 = scalar_select %p239, %s238, 15
        %s241 = smul.addr %s240, 8
        %s242 = scalar_lea.vmem %s2, %s241
      $region40: #{tpu_custom_call.1} parent=35 // pred_fallthru
        _
    $region36: #{tpu_custom_call.1} parent=5 // pred_fallthru
      _
  $region6: #{tpu_custom_call.1} parent=0 // loop_footer
    %s12 = sadd.s32 1, %s8
  $region7: #{tpu_custom_call.1} parent=0 // loop_footer_branch
    %7 = sbr.rel target = $region3
  $region8: #{tpu_custom_call.1} parent=0 // loop_exit
    _

</llo_original>
